<compile_context>
chip_gen: v7x
topology: tpu7x:2x2x1
jax: 0.10.0
libtpu: 0.0.40
codegen_flags: <defaults>
</compile_context>

<pallas_src>
import functools

import jax
import jax.numpy as jnp
from jax.experimental import pallas as pl
from jax.experimental.pallas import tpu as pltpu

_LANE = 128

# Measured fraction of HBM roofline vs tile edge (per-grid-step overhead model).
_TILE_EFF = {128: 0.29, 256: 0.63, 512: 0.85, 1024: 0.86, 2048: 0.86}


# --------------------------------------------------------------------------- #
# Helpers
# --------------------------------------------------------------------------- #
def _round_up(x, m):
    return ((x + m - 1) // m) * m


def _pad2d(a, rows, cols):
    return jnp.pad(a, ((0, rows - a.shape[0]), (0, cols - a.shape[1])))


def _chip_params():
    """(max tile edge, scoped-VMEM limit) for this chip generation."""
    try:
        vmem = pltpu.get_tpu_info().vmem_capacity_bytes
    except Exception:
        vmem = 64 << 20
    if vmem >= (96 << 20):          # v5e / v6e: 128 MiB physical VMEM
        return 2048, 96 << 20
    return 1024, 48 << 20           # v7x: 64 MiB physical VMEM (per TC)


# --------------------------------------------------------------------------- #
# Kernels
# --------------------------------------------------------------------------- #
def _gcn_agg_kernel(tk_slice, adj_ref, y_ref, w_ref, o_ref, acc_ref):
    # acc = sum_k adj[i,k] @ y[k] ; out[i] = relu(bf16(acc) @ W)
    k = pl.program_id(1)

    @pl.when(k == 0)
    def _():
        acc_ref[...] = jnp.zeros_like(acc_ref)

    if tk_slice is None:                      # y streamed: block is the k-th slab
        y_blk = y_ref[...]
    else:                                     # y resident: slice the k-th slab
        start = pl.multiple_of(k * tk_slice, tk_slice)
        y_blk = y_ref[pl.ds(start, tk_slice), :]

    acc_ref[...] += jnp.dot(adj_ref[...], y_blk,
                            preferred_element_type=jnp.float32)

    @pl.when(k == pl.num_programs(1) - 1)
    def _():
        out = jnp.dot(acc_ref[...].astype(jnp.bfloat16), w_ref[...],
                      preferred_element_type=jnp.float32)
        o_ref[...] = jnp.maximum(out, 0.0).astype(o_ref.dtype)


def _concat_agg_kernel(tk_slice, adj_ref, y_ref, x_ref, w_h_ref, w_x_ref,
                       o_ref, acc_ref):
    # acc = sum_k adj[i,k] @ y[k]
    # out[i] = relu(cat([acc, x[i]], 1) @ W) = relu(bf16(acc) @ W_h + x[i] @ W_x)
    k = pl.program_id(1)

    @pl.when(k == 0)
    def _():
        acc_ref[...] = jnp.zeros_like(acc_ref)

    if tk_slice is None:
        y_blk = y_ref[...]
    else:
        start = pl.multiple_of(k * tk_slice, tk_slice)
        y_blk = y_ref[pl.ds(start, tk_slice), :]

    acc_ref[...] += jnp.dot(adj_ref[...], y_blk,
                            preferred_element_type=jnp.float32)

    @pl.when(k == pl.num_programs(1) - 1)
    def _():
        out = jnp.dot(acc_ref[...].astype(jnp.bfloat16), w_h_ref[...],
                      preferred_element_type=jnp.float32)
        out += jnp.dot(x_ref[...], w_x_ref[...],
                       preferred_element_type=jnp.float32)
        o_ref[...] = jnp.maximum(out, 0.0).astype(o_ref.dtype)


def _pool_kernel(x_ref, wfc_ref, bfc_ref, o_ref):
    # pooled = relu(x @ Wfc + b), all-bf16 operands, fp32 MXU accumulation.
    pooled = jnp.dot(x_ref[...], wfc_ref[...],
                     preferred_element_type=jnp.float32)
    pooled = jnp.maximum(pooled + bfc_ref[...].astype(jnp.float32), 0.0)
    o_ref[...] = pooled.astype(o_ref.dtype)


# --------------------------------------------------------------------------- #
# Module wrapper
# --------------------------------------------------------------------------- #
class Aggregator:
    """JAX/Pallas port of the PyTorch GraphSAGE Aggregator (forward only)."""

    def __init__(self, in_dim, out_dim, agg_type, key, *,
                 max_tile=None, y_resident_cap_bytes=16 << 20):
        self.in_dim = in_dim
        self.out_dim = out_dim
        self.agg_type = agg_type

        self.d_p = _round_up(in_dim, _LANE)   # lane-dense feature dim
        self.o_p = _round_up(out_dim, _LANE)  # lane-dense output dim

        tile_target, vmem_limit = _chip_params()
        if max_tile is not None:
            tile_target = min(tile_target, max_tile)
        self.tile_target = max(_LANE, tile_target)
        self.vmem_limit = vmem_limit
        self.vmem_budget = int(0.8 * vmem_limit)   # leave headroom for Mosaic
        self.y_resident_cap = y_resident_cap_bytes

        k_w, k_fcw, k_fcb = jax.random.split(key, 3)

        w_rows = in_dim if agg_type == "gcn" else 2 * in_dim
        # xavier_uniform_: U(-a, a), a = sqrt(6 / (fan_in + fan_out))
        a = (6.0 / (w_rows + out_dim)) ** 0.5
        self.W = jax.random.uniform(
            k_w, (w_rows, out_dim), jnp.float32, minval=-a, maxval=a)

        # Lane-dense, zero-padded, bf16 parameter copies consumed by the MXU.
        if agg_type == "gcn":
            self.W_p = _pad2d(self.W, self.d_p, self.o_p).astype(jnp.bfloat16)
        else:
            self.Wh_p = _pad2d(self.W[:in_dim], self.d_p, self.o_p).astype(jnp.bfloat16)
            self.Wx_p = _pad2d(self.W[in_dim:], self.d_p, self.o_p).astype(jnp.bfloat16)

        if agg_type == "meanpooling":
            # PyTorch Linear default init, stored pre-transposed: x @ Wfc + b.
            bound = 1.0 / (in_dim ** 0.5)
            self.Wfc = jax.random.uniform(
                k_fcw, (in_dim, in_dim), jnp.float32, minval=-bound, maxval=bound)
            self.bfc = jax.random.uniform(
                k_fcb, (1, in_dim), jnp.float32, minval=-bound, maxval=bound)
            self.Wfc_p = _pad2d(self.Wfc, self.d_p, self.d_p).astype(jnp.bfloat16)
            self.bfc_p = _pad2d(self.bfc, 1, self.d_p).astype(jnp.bfloat16)

    # ------------------------------------------------------------------ #
    # Tiling policy
    # ------------------------------------------------------------------ #
    def _agg_budget_bytes(self, tm, tk, n_pad, y_resident):
        """Conservative VMEM footprint of the aggregation kernel (double-buffered)."""
        d_p, o_p = self.d_p, self.o_p
        b = 2 * tm * tk * 2                                        # adj blocks (bf16)
        b += (2 * n_pad * d_p * 2) if y_resident else (2 * tk * d_p * 2)  # y
        b += tm * d_p * 4                                          # fp32 acc scratch
        b += 2 * tm * o_p * 4                                      # fp32 output blocks
        n_w = 1 if self.agg_type == "gcn" else 2
        b += 2 * n_w * d_p * o_p * 2                               # weights (bf16)
        if self.agg_type != "gcn":
            b += 2 * tm * d_p * 2                                  # x blocks (bf16)
        return b

    def _choose_tiles(self, n):
        n0 = _round_up(n, _LANE)
        # Base tile edge: trade extra padded adj bytes against measured per-tile
        # pipeline efficiency (pad N UP instead of shrinking tiles to 128).
        best_t, best_cost = _LANE, None
        for t, eff in _TILE_EFF.items():
            if t > self.tile_target:
                continue
            n_pad_t = _round_up(n0, t)
            cost = (n_pad_t * n_pad_t) / eff        # padded adj bytes / efficiency
            if best_cost is None or cost < best_cost:
                best_t, best_cost = t, cost
        t = best_t
        n_pad = _round_up(n0, t)

        # Row tile: keep >= 2 row tiles so the "parallel" axis feeds both v7x TCs.
        tm = t
        while tm > _LANE and n_pad // tm < 2:
            tm //= 2
        tk = t

        # y fully resident in VMEM when it fits comfortably.
        y_resident = 2 * n_pad * self.d_p * 2 <= self.y_resident_cap

        # Fit the VMEM budget: shrink TK first (keeps TM large -> fewer epilogues
        # / output writebacks), then TM, then fall back to streamed y.
        while self._agg_budget_bytes(tm, tk, n_pad, y_resident) > self.vmem_budget:
            if tk > _LANE:
                tk //= 2
            elif tm > _LANE:
                tm //= 2
            elif y_resident:
                y_resident = False
            else:
                break
        return n_pad, tm, tk, y_resident

    def _pool_tiles(self, n_pad, tm_hint):
        """Row tile + Wfc column tile for the pooling kernel, VMEM-budget aware."""
        d_p = self.d_p
        divisors = [d for d in range(_LANE, d_p + 1, _LANE) if d_p % d == 0]
        divisors.sort(reverse=True)

        def bytes_needed(tm, td):
            # x, Wfc, bias, out blocks — all bf16, double-buffered.
            return 2 * (tm * d_p + d_p * td + td + tm * td) * 2

        tm = tm_hint
        idx = 0
        td = divisors[idx]
        while bytes_needed(tm, td) > self.vmem_budget and idx + 1 < len(divisors):
            idx += 1
            td = divisors[idx]
        while bytes_needed(tm, td) > self.vmem_budget and tm > _LANE:
            tm //= 2
        return tm, td

    # ------------------------------------------------------------------ #
    # pallas_call wrappers
    # ------------------------------------------------------------------ #
    def _compiler_params(self, dims):
        return pltpu.CompilerParams(
            dimension_semantics=dims,
            vmem_limit_bytes=self.vmem_limit,
        )

    def _pool(self, x_p, n_pad, tm_hint):
        d_p = self.d_p
        tm, td = self._pool_tiles(n_pad, tm_hint)
        n_col = d_p // td
        wfc_reads = (n_pad // tm) if n_col > 1 else 1
        cost = pl.CostEstimate(
            flops=2 * n_pad * d_p * d_p,
            transcendentals=0,
            bytes_accessed=(n_pad * d_p * 2            # x in
                            + wfc_reads * d_p * d_p * 2  # Wfc (re-read per row tile if col-tiled)
                            + d_p * 2                    # bias
                            + n_pad * d_p * 2),          # pooled out
        )
        return pl.pallas_call(
            _pool_kernel,
            out_shape=jax.ShapeDtypeStruct((n_pad, d_p), jnp.bfloat16),
            grid_spec=pltpu.PrefetchScalarGridSpec(
                num_scalar_prefetch=0,
                grid=(n_pad // tm, n_col),
                in_specs=[
                    pl.BlockSpec((tm, d_p), lambda i, j: (i, 0)),
                    pl.BlockSpec((d_p, td), lambda i, j: (0, j)),
                    pl.BlockSpec((1, td), lambda i, j: (0, j)),
                ],
                out_specs=pl.BlockSpec((tm, td), lambda i, j: (i, j)),
            ),
            compiler_params=self._compiler_params(("parallel", "parallel")),
            cost_estimate=cost,
        )(x_p, self.Wfc_p, self.bfc_p)

    def _y_spec_and_kernel(self, base_kernel, n_pad, tk, y_resident):
        if y_resident:
            y_spec = pl.BlockSpec((n_pad, self.d_p), lambda i, k: (0, 0))
            kernel = functools.partial(base_kernel, tk)
        else:
            y_spec = pl.BlockSpec((tk, self.d_p), lambda i, k: (k, 0))
            kernel = functools.partial(base_kernel, None)
        return y_spec, kernel

    def _agg_gcn(self, adj_p, y_p, n_pad, tm, tk, y_resident):
        d_p, o_p = self.d_p, self.o_p
        n_row_tiles = n_pad // tm
        y_bytes = n_pad * d_p * 2 if y_resident else n_row_tiles * n_pad * d_p * 2
        cost = pl.CostEstimate(
            flops=2 * n_pad * n_pad * d_p + 2 * n_pad * d_p * o_p,
            transcendentals=0,
            bytes_accessed=(n_pad * n_pad * 2 + y_bytes
                            + d_p * o_p * 2 + n_pad * o_p * 4),
        )
        y_spec, kernel = self._y_spec_and_kernel(_gcn_agg_kernel, n_pad, tk, y_resident)
        return pl.pallas_call(
            kernel,
            out_shape=jax.ShapeDtypeStruct((n_pad, o_p), jnp.float32),
            grid_spec=pltpu.PrefetchScalarGridSpec(
                num_scalar_prefetch=0,
                grid=(n_pad // tm, n_pad // tk),
                in_specs=[
                    pl.BlockSpec((tm, tk), lambda i, k: (i, k)),
                    y_spec,
                    pl.BlockSpec((d_p, o_p), lambda i, k: (0, 0)),
                ],
                out_specs=pl.BlockSpec((tm, o_p), lambda i, k: (i, 0)),
                scratch_shapes=[pltpu.VMEM((tm, d_p), jnp.float32)],
            ),
            compiler_params=self._compiler_params(("parallel", "arbitrary")),
            cost_estimate=cost,
        )(adj_p, y_p, self.W_p)

    def _agg_concat(self, adj_p, y_p, x_p, n_pad, tm, tk, y_resident):
        d_p, o_p = self.d_p, self.o_p
        n_row_tiles = n_pad // tm
        y_bytes = n_pad * d_p * 2 if y_resident else n_row_tiles * n_pad * d_p * 2
        cost = pl.CostEstimate(
            flops=2 * n_pad * n_pad * d_p + 4 * n_pad * d_p * o_p,
            transcendentals=0,
            bytes_accessed=(n_pad * n_pad * 2 + y_bytes + n_pad * d_p * 2
                            + 2 * d_p * o_p * 2 + n_pad * o_p * 4),
        )
        y_spec, kernel = self._y_spec_and_kernel(_concat_agg_kernel, n_pad, tk, y_resident)
        return pl.pallas_call(
            kernel,
            out_shape=jax.ShapeDtypeStruct((n_pad, o_p), jnp.float32),
            grid_spec=pltpu.PrefetchScalarGridSpec(
                num_scalar_prefetch=0,
                grid=(n_pad // tm, n_pad // tk),
                in_specs=[
                    pl.BlockSpec((tm, tk), lambda i, k: (i, k)),
                    y_spec,
                    pl.BlockSpec((tm, d_p), lambda i, k: (i, 0)),
                    pl.BlockSpec((d_p, o_p), lambda i, k: (0, 0)),
                    pl.BlockSpec((d_p, o_p), lambda i, k: (0, 0)),
                ],
                out_specs=pl.BlockSpec((tm, o_p), lambda i, k: (i, 0)),
                scratch_shapes=[pltpu.VMEM((tm, d_p), jnp.float32)],
            ),
            compiler_params=self._compiler_params(("parallel", "arbitrary")),
            cost_estimate=cost,
        )(adj_p, y_p, x_p, self.Wh_p, self.Wx_p)

    # ------------------------------------------------------------------ #
    def __call__(self, x, adj):
        n = x.shape[0]
        n_pad, tm, tk, y_resident = self._choose_tiles(n)

        # Cast to bf16 BEFORE padding so the wrapper never materializes an
        # n_pad x n_pad fp32 intermediate; zero padding keeps the valid region exact.
        adj_p = _pad2d(adj.astype(jnp.bfloat16), n_pad, n_pad)
        x_p = _pad2d(x.astype(jnp.bfloat16), n_pad, self.d_p)
        # TODO(synk): on v7x the adjacency could be cast to float8_e4m3 (MXU-native
        # there) to halve the dominant HBM stream; disabled pending accuracy checks.

        if self.agg_type == "meanpooling":
            y_p = self._pool(x_p, n_pad, tm)       # relu(x @ Wfc + b), bf16
        else:
            y_p = x_p

        if self.agg_type == "gcn":
            out_p = self._agg_gcn(adj_p, y_p, n_pad, tm, tk, y_resident)
        else:
            out_p = self._agg_concat(adj_p, y_p, x_p, n_pad, tm, tk, y_resident)

        return out_p[:n, : self.out_dim]

    # Pure-JAX reference (fp32 math mirroring the kernel's bf16 rounding points)
    # for correctness checking.
    def reference(self, x, adj):
        f32 = jnp.float32
        q = lambda a: a.astype(jnp.bfloat16).astype(f32)
        xq, aq = q(x), q(adj)
        if self.agg_type == "meanpooling":
            pooled = jnp.maximum(xq @ q(self.Wfc) + q(self.bfc), 0.0)
            y = q(pooled)
        else:
            y = xq
        h = q(aq @ y)                # kernel casts the fp32 accumulator to bf16
        if self.agg_type == "gcn":
            out = h @ q(self.W)
        else:
            out = h @ q(self.W[: self.in_dim]) + xq @ q(self.W[self.in_dim:])
        return jnp.maximum(out, 0.0)


# --------------------------------------------------------------------------- #
# Main
# --------------------------------------------------------------------------- #
if __name__ == "__main__":
    key = jax.random.PRNGKey(0)
    k_x, k_adj, k_params = jax.random.split(key, 3)

    # Deliberately non-multiples of 128 to exercise the padding / slicing path.
    N, in_dim, out_dim = 200, 40, 24

    x = jax.random.normal(k_x, (N, in_dim), jnp.float32)

    # Row-normalized adjacency (dense stand-in for the sparse normalized adj).
    raw_adj = (jax.random.uniform(k_adj, (N, N)) > 0.5).astype(jnp.float32)
    raw_adj = raw_adj + jnp.eye(N, dtype=jnp.float32)
    adj = raw_adj / jnp.sum(raw_adj, axis=1, keepdims=True)

    configs = [
        dict(max_tile=128),                           # multi-step reduction, resident y
        dict(),                                       # default chip tiling
        dict(max_tile=128, y_resident_cap_bytes=0),   # streamed-y path
    ]

    ok = True
    for i, agg_type in enumerate(["mean", "gcn", "meanpooling"]):
        for cfg in configs:
            agg = Aggregator(in_dim, out_dim, agg_type,
                             jax.random.fold_in(k_params, i), **cfg)
            out = jax.block_until_ready(agg(x, adj))
            ref = agg.reference(x, adj)
            good = (out.shape == ref.shape
                    and bool(jnp.allclose(out, ref, atol=2e-2, rtol=2e-2)))
            if not good:
                ok = False
                err = (jnp.max(jnp.abs(out - ref))
                       if out.shape == ref.shape else None)
                print(f"MISMATCH agg_type={agg_type} cfg={cfg} max_abs_err={err}")

    if ok:
        print("KERNEL_OK")
</pallas_src>

<mosaic_0001>
module attributes {stable_mosaic.version = 11 : i64} {
  func.func @_concat_agg_kernel(%arg0: i32, %arg1: i32, %arg2: memref<128x128xbf16, #tpu.memory_space<vmem>>, %arg3: memref<256x128xbf16, #tpu.memory_space<vmem>>, %arg4: memref<128x128xbf16, #tpu.memory_space<vmem>>, %arg5: memref<128x128xbf16, #tpu.memory_space<vmem>>, %arg6: memref<128x128xbf16, #tpu.memory_space<vmem>>, %arg7: memref<128x128xf32, #tpu.memory_space<vmem>>, %arg8: memref<128x128xf32, #tpu.memory_space<vmem>>) attributes {dimension_semantics = [#tpu.dimension_semantics<parallel>, #tpu.dimension_semantics<arbitrary>], iteration_bounds = array<i64: 2, 2>, scalar_prefetch = 0 : i64, scratch_operands = 1 : i64, tpu.core_type = #tpu.core_type<tc>, window_params = [{transform_indices = @transform_0, window_bounds = array<i64: 128, 128>}, {pipeline_mode = #tpu.pipeline_mode<synchronous>, transform_indices = @transform_1, window_bounds = array<i64: 256, 128>}, {transform_indices = @transform_2, window_bounds = array<i64: 128, 128>}, {pipeline_mode = #tpu.pipeline_mode<synchronous>, transform_indices = @transform_3, window_bounds = array<i64: 128, 128>}, {pipeline_mode = #tpu.pipeline_mode<synchronous>, transform_indices = @transform_4, window_bounds = array<i64: 128, 128>}, {transform_indices = @transform_5, window_bounds = array<i64: 128, 128>}]} {
    %c0_i32 = arith.constant 0 : i32
    %0 = arith.cmpi eq, %arg1, %c0_i32 : i32
    %1 = arith.extui %0 : i1 to i32
    %c0_i32_0 = arith.constant 0 : i32
    %2 = arith.cmpi ne, %1, %c0_i32_0 : i32
    scf.if %2 {
      %cst_8 = arith.constant 0.000000e+00 : f32
      %15 = vector.broadcast %cst_8 : f32 to vector<128x128xf32>
      %c0_9 = arith.constant 0 : index
      %c0_10 = arith.constant 0 : index
      %16 = vector.load %arg8[%c0_9, %c0_10] : memref<128x128xf32, #tpu.memory_space<vmem>>, vector<128x128xf32>
      tpu.vector_store %arg8[%c0_9, %c0_10], %15 {strides = array<i32>} : memref<128x128xf32, #tpu.memory_space<vmem>>, vector<128x128xf32>,
    } else {
    }
    %c128_i32 = arith.constant 128 : i32
    %3 = arith.muli %arg1, %c128_i32 : i32
    %4 = tpu.assume_multiple %3, 128 : i32
    %5 = arith.index_cast %4 : i32 to index
    %c0 = arith.constant 0 : index
    %6 = vector.load %arg3[%5, %c0] : memref<256x128xbf16, #tpu.memory_space<vmem>>, vector<128x128xbf16>
    %c0_1 = arith.constant 0 : index
    %c0_2 = arith.constant 0 : index
    %7 = vector.load %arg8[%c0_1, %c0_2] : memref<128x128xf32, #tpu.memory_space<vmem>>, vector<128x128xf32>
    %c0_3 = arith.constant 0 : index
    %c0_4 = arith.constant 0 : index
    %8 = vector.load %arg2[%c0_3, %c0_4] : memref<128x128xbf16, #tpu.memory_space<vmem>>, vector<128x128xbf16>
    %cst = arith.constant dense<0.000000e+00> : vector<128x128xf32>
    %9 = tpu.matmul %8, %6, %cst {dimension_numbers = #tpu.dot_dimension_numbers<[1], [0], [0], [1], [0, 0, 1, 1], [], []>} : vector<128x128xbf16>, vector<128x128xbf16>, vector<128x128xf32> -> vector<128x128xf32>
    %10 = arith.addf %7, %9 : vector<128x128xf32>
    %c0_5 = arith.constant 0 : index
    %c0_6 = arith.constant 0 : index
    %11 = vector.load %arg8[%c0_5, %c0_6] : memref<128x128xf32, #tpu.memory_space<vmem>>, vector<128x128xf32>
    tpu.vector_store %arg8[%c0_5, %c0_6], %10 {strides = array<i32>} : memref<128x128xf32, #tpu.memory_space<vmem>>, vector<128x128xf32>,
    %c1_i32 = arith.constant 1 : i32
    %12 = arith.cmpi eq, %arg1, %c1_i32 : i32
    %13 = arith.extui %12 : i1 to i32
    %c0_i32_7 = arith.constant 0 : i32
    %14 = arith.cmpi ne, %13, %c0_i32_7 : i32
    scf.if %14 {
      %c0_8 = arith.constant 0 : index
      %c0_9 = arith.constant 0 : index
      %15 = vector.load %arg8[%c0_8, %c0_9] : memref<128x128xf32, #tpu.memory_space<vmem>>, vector<128x128xf32>
      %16 = arith.truncf %15 : vector<128x128xf32> to vector<128x128xbf16>
      %c0_10 = arith.constant 0 : index
      %c0_11 = arith.constant 0 : index
      %17 = vector.load %arg5[%c0_10, %c0_11] : memref<128x128xbf16, #tpu.memory_space<vmem>>, vector<128x128xbf16>
      %cst_12 = arith.constant dense<0.000000e+00> : vector<128x128xf32>
      %18 = tpu.matmul %16, %17, %cst_12 {dimension_numbers = #tpu.dot_dimension_numbers<[1], [0], [0], [1], [0, 0, 1, 1], [], []>} : vector<128x128xbf16>, vector<128x128xbf16>, vector<128x128xf32> -> vector<128x128xf32>
      %c0_13 = arith.constant 0 : index
      %c0_14 = arith.constant 0 : index
      %19 = vector.load %arg4[%c0_13, %c0_14] : memref<128x128xbf16, #tpu.memory_space<vmem>>, vector<128x128xbf16>
      %c0_15 = arith.constant 0 : index
      %c0_16 = arith.constant 0 : index
      %20 = vector.load %arg6[%c0_15, %c0_16] : memref<128x128xbf16, #tpu.memory_space<vmem>>, vector<128x128xbf16>
      %cst_17 = arith.constant dense<0.000000e+00> : vector<128x128xf32>
      %21 = tpu.matmul %19, %20, %cst_17 {dimension_numbers = #tpu.dot_dimension_numbers<[1], [0], [0], [1], [0, 0, 1, 1], [], []>} : vector<128x128xbf16>, vector<128x128xbf16>, vector<128x128xf32> -> vector<128x128xf32>
      %22 = arith.addf %18, %21 : vector<128x128xf32>
      %cst_18 = arith.constant 0.000000e+00 : f32
      %23 = vector.broadcast %cst_18 : f32 to vector<128x128xf32>
      %24 = arith.maximumf %22, %23 : vector<128x128xf32>
      %c0_19 = arith.constant 0 : index
      %c0_20 = arith.constant 0 : index
      %25 = vector.load %arg7[%c0_19, %c0_20] : memref<128x128xf32, #tpu.memory_space<vmem>>, vector<128x128xf32>
      tpu.vector_store %arg7[%c0_19, %c0_20], %24 {strides = array<i32>} : memref<128x128xf32, #tpu.memory_space<vmem>>, vector<128x128xf32>,
    } else {
    }
    return
  }
  func.func @transform_0(%arg0: i32, %arg1: i32) -> (i32, i32) {
    %c0_i32 = arith.constant 0 : i32
    return %arg0, %arg1 : i32, i32
  }
  func.func @transform_1(%arg0: i32, %arg1: i32) -> (i32, i32) {
    %c0_i32 = arith.constant 0 : i32
    %c0_i32_0 = arith.constant 0 : i32
    %c0_i32_1 = arith.constant 0 : i32
    return %c0_i32, %c0_i32_0 : i32, i32
  }
  func.func @transform_2(%arg0: i32, %arg1: i32) -> (i32, i32) {
    %c0_i32 = arith.constant 0 : i32
    %c0_i32_0 = arith.constant 0 : i32
    return %arg0, %c0_i32 : i32, i32
  }
  func.func @transform_3(%arg0: i32, %arg1: i32) -> (i32, i32) {
    %c0_i32 = arith.constant 0 : i32
    %c0_i32_0 = arith.constant 0 : i32
    %c0_i32_1 = arith.constant 0 : i32
    return %c0_i32, %c0_i32_0 : i32, i32
  }
  func.func @transform_4(%arg0: i32, %arg1: i32) -> (i32, i32) {
    %c0_i32 = arith.constant 0 : i32
    %c0_i32_0 = arith.constant 0 : i32
    %c0_i32_1 = arith.constant 0 : i32
    return %c0_i32, %c0_i32_0 : i32, i32
  }
  func.func @transform_5(%arg0: i32, %arg1: i32) -> (i32, i32) {
    %c0_i32 = arith.constant 0 : i32
    %c0_i32_0 = arith.constant 0 : i32
    return %arg0, %c0_i32 : i32, i32
  }
}

</mosaic_0001>

<llo_original>
// kernel: tpu_custom_call.1
$region0: #{tpu_custom_call.1}
  #allocation0 [shape = 'u32[]', space=smem, size = 0x4, offset = 0x4, fixed_abs, tag = 'smem constant byte address 0x4 - core index']
  #allocation1 [shape = 'u32[144,128]{1,0:T(1,128)}', space=vmem, size = 0x12000, scoped, tag = 'internal scratch']
  #allocation2 [shape = 'f32[128,128]{1,0:T(8,128)}', space=vmem, size = 0x10000, scoped, tag = 'scratch operand']
  %s0 = inlined_call_operand.hbm [shape: bf16[256,256], index: 0, kind: input, shape index: {}]
  %s1 = inlined_call_operand.hbm [shape: bf16[256,128], index: 1, kind: input, shape index: {}]
  %s2 = inlined_call_operand.hbm [shape: bf16[256,128], index: 2, kind: input, shape index: {}]
  %s3 = inlined_call_operand.hbm [shape: bf16[128,128], index: 3, kind: input, shape index: {}]
  %s4 = inlined_call_operand.hbm [shape: bf16[128,128], index: 4, kind: input, shape index: {}]
  %s5 = inlined_call_operand.hbm [shape: f32[256,128], index: 5, kind: output, shape index: {}]
  %s6 = sld [smem:[#allocation0]]
  $region81: #{tpu_custom_call.1} parent=0
    _
  %s8 = ssub.s32 1, %s6
  %s9 = scalar_select 0, %s8, %s6
  $region1: #{tpu_custom_call.1} parent=0
    #allocation3 [shape = 'u8[65536]{0}', space=vmem, size = 0x10000, scoped, tag = 'input window, operand 0']
    #allocation4 [shape = 's32[2]{0}', space=sflag, size = 0x8, scoped, tag = 'scoped memory for tpu_custom_call.1']
    #allocation5 [shape = 's32[2]{0}', space=sflag, size = 0x8, scoped, tag = 'scoped memory for tpu_custom_call.1']
    #allocation6 [shape = 'u8[65536]{0}', space=vmem, size = 0x10000, scoped, tag = 'input window, operand 1, single buffered']
    #allocation7 [shape = 's32[1]{0}', space=sflag, size = 0x4, scoped, tag = 'scoped memory for tpu_custom_call.1']
    #allocation8 [shape = 'u8[65536]{0}', space=vmem, size = 0x10000, scoped, tag = 'input window, operand 2']
    #allocation9 [shape = 'u8[32768]{0}', space=vmem, size = 0x8000, scoped, tag = 'input window, operand 3, single buffered']
    #allocation10 [shape = 'u8[32768]{0}', space=vmem, size = 0x8000, scoped, tag = 'input window, operand 4, single buffered']
    #allocation11 [shape = 's32[1]{0}', space=sflag, size = 0x4, scoped, tag = 'scoped memory for tpu_custom_call.1']
    #allocation12 [shape = 'u8[131072]{0}', space=vmem, size = 0x20000, scoped, tag = 'output window, operand 0']
    %10 = vsyncpa [#allocation4], 0
    %s11 = scalar_lea.sflag [#allocation4], 1
    %12 = vsyncpa %s11, 0
    %13 = vsyncpa [#allocation7], 0
    %14 = vsyncpa [#allocation11], 0
    %15 = vsyncpa [#allocation5], 0
    %s16 = scalar_lea.sflag [#allocation5], 1
    %17 = vsyncpa %s16, 0
    loop: start=0, step=1, limit=6
    $region2: #{tpu_custom_call.1} parent=1 // loop_pre_header
      _
    $region3: #{tpu_custom_call.1} parent=1 // loop_header
      %s19 = sphi 0, %s23
      %p20 = scmp.ge.s32.totalorder %s19, 6
      %s26 = sphi 0, %s38
      %s27 = sphi 0, %s34
      %s28 = sphi 0, %s26
      %s29 = sphi 0, %s27
      %s30 = sphi 0, %s28
      %s31 = sphi 0, %s29
      %s43 = sphi 0, %s45
      %s46 = sphi 0, %s43
      %s47 = sphi 0, %s46
      %s63 = sphi 0, %s47
      %s67 = sphi 0, %s67
      %s69 = sphi 0, %s67
      %s70 = sphi 0, %s69
      %s84 = sphi 0, %s70
      %s90 = sphi 0, %s92
      %s93 = sphi 0, %s90
      %s94 = sphi 0, %s93
      %s110 = sphi 0, %s94
      %s114 = sphi 0, %s114
      %s116 = sphi 0, %s114
      %s117 = sphi 0, %s116
      %s131 = sphi 0, %s117
      %s135 = sphi 0, %s135
      %s137 = sphi 0, %s135
      %s138 = sphi 0, %s137
      %s152 = sphi 0, %s138
      %s158 = sphi 0, %s160
      %s161 = sphi 0, %s158
      %s162 = sphi 0, %s161
      %s178 = sphi 0, %s162
    $region4: #{tpu_custom_call.1} parent=1 // loop_header_branch
      %22 = sbr.rel (%p20) target = $region8
    $region5: #{tpu_custom_call.1} parent=1 // loop_body
      %s24 = ssub.s32 %s19, 1
      %s25 = ssub.s32 %s19, 2
      %s32 = sadd.s32 1, %s27
      %p33 = scmp.ge.s32.totalorder %s32, 2
      %s34 = scalar_select %p33, 0, %s32
      %s35 = sadd.s32 1, %s26
      %s36 = scalar_select %p33, %s35, %s26
      %p37 = scmp.ge.s32.totalorder %s36, 2
      %s38 = scalar_select %p37, 0, %s36
      %s39 = ssub.s32 %s26, %s38
      %s40 = ssub.s32 %s27, %s34
      %s41 = sor.u32 %s39, %s40
      %p42 = scmp.eq.s32.totalorder %s41, 0
      %s44 = sadd.s32 %s43, 1
      %s45 = scalar_select %p42, %s43, %s44
      %p48 = pneg %p42
      %p49 = scmp.eq.s32.totalorder %s19, 3
      %p50 = por %p48, %p49
      %p51 = scmp.ne.s32.totalorder %s43, %s46
      %p52 = scmp.eq.s32.totalorder %s19, 0
      %p53 = por %p51, %p52
      %p54 = scmp.ne.s32.totalorder %s43, %s46
      %p55 = scmp.eq.s32.totalorder %s24, 3
      %p56 = por %p54, %p55
      %p57 = scmp.ne.s32.totalorder %s46, %s47
      %p58 = scmp.eq.s32.totalorder %s24, 0
      %p59 = por %p57, %p58
      %p60 = scmp.ne.s32.totalorder %s46, %s47
      %p61 = scmp.eq.s32.totalorder %s25, 3
      %p62 = por %p60, %p61
      %p64 = scmp.ne.s32.totalorder %s47, %s63
      %p65 = scmp.eq.s32.totalorder %s25, 0
      %p66 = por %p64, %p65
      %s68 = sadd.s32 %s67, 1
      %p71 = scmp.eq.s32.totalorder %s19, 3
      %p72 = scmp.ne.s32.totalorder %s67, %s69
      %p73 = scmp.eq.s32.totalorder %s19, 0
      %p74 = por %p72, %p73
      %p75 = scmp.ne.s32.totalorder %s67, %s69
      %p76 = scmp.eq.s32.totalorder %s24, 3
      %p77 = por %p75, %p76
      %p78 = scmp.ne.s32.totalorder %s69, %s70
      %p79 = scmp.eq.s32.totalorder %s24, 0
      %p80 = por %p78, %p79
      %p81 = scmp.ne.s32.totalorder %s69, %s70
      %p82 = scmp.eq.s32.totalorder %s25, 3
      %p83 = por %p81, %p82
      %p85 = scmp.ne.s32.totalorder %s70, %s84
      %p86 = scmp.eq.s32.totalorder %s25, 0
      %p87 = por %p85, %p86
      %s88 = ssub.s32 %s26, %s38
      %p89 = scmp.eq.s32.totalorder %s88, 0
      %s91 = sadd.s32 %s90, 1
      %s92 = scalar_select %p89, %s90, %s91
      %p95 = pneg %p89
      %p96 = scmp.eq.s32.totalorder %s19, 3
      %p97 = por %p95, %p96
      %p98 = scmp.ne.s32.totalorder %s90, %s93
      %p99 = scmp.eq.s32.totalorder %s19, 0
      %p100 = por %p98, %p99
      %p101 = scmp.ne.s32.totalorder %s90, %s93
      %p102 = scmp.eq.s32.totalorder %s24, 3
      %p103 = por %p101, %p102
      %p104 = scmp.ne.s32.totalorder %s93, %s94
      %p105 = scmp.eq.s32.totalorder %s24, 0
      %p106 = por %p104, %p105
      %p107 = scmp.ne.s32.totalorder %s93, %s94
      %p108 = scmp.eq.s32.totalorder %s25, 3
      %p109 = por %p107, %p108
      %p111 = scmp.ne.s32.totalorder %s94, %s110
      %p112 = scmp.eq.s32.totalorder %s25, 0
      %p113 = por %p111, %p112
      %s115 = sadd.s32 %s114, 1
      %p118 = scmp.eq.s32.totalorder %s19, 3
      %p119 = scmp.ne.s32.totalorder %s114, %s116
      %p120 = scmp.eq.s32.totalorder %s19, 0
      %p121 = por %p119, %p120
      %p122 = scmp.ne.s32.totalorder %s114, %s116
      %p123 = scmp.eq.s32.totalorder %s24, 3
      %p124 = por %p122, %p123
      %p125 = scmp.ne.s32.totalorder %s116, %s117
      %p126 = scmp.eq.s32.totalorder %s24, 0
      %p127 = por %p125, %p126
      %p128 = scmp.ne.s32.totalorder %s116, %s117
      %p129 = scmp.eq.s32.totalorder %s25, 3
      %p130 = por %p128, %p129
      %p132 = scmp.ne.s32.totalorder %s117, %s131
      %p133 = scmp.eq.s32.totalorder %s25, 0
      %p134 = por %p132, %p133
      %s136 = sadd.s32 %s135, 1
      %p139 = scmp.eq.s32.totalorder %s19, 3
      %p140 = scmp.ne.s32.totalorder %s135, %s137
      %p141 = scmp.eq.s32.totalorder %s19, 0
      %p142 = por %p140, %p141
      %p143 = scmp.ne.s32.totalorder %s135, %s137
      %p144 = scmp.eq.s32.totalorder %s24, 3
      %p145 = por %p143, %p144
      %p146 = scmp.ne.s32.totalorder %s137, %s138
      %p147 = scmp.eq.s32.totalorder %s24, 0
      %p148 = por %p146, %p147
      %p149 = scmp.ne.s32.totalorder %s137, %s138
      %p150 = scmp.eq.s32.totalorder %s25, 3
      %p151 = por %p149, %p150
      %p153 = scmp.ne.s32.totalorder %s138, %s152
      %p154 = scmp.eq.s32.totalorder %s25, 0
      %p155 = por %p153, %p154
      %s156 = ssub.s32 %s26, %s38
      %p157 = scmp.eq.s32.totalorder %s156, 0
      %s159 = sadd.s32 %s158, 1
      %s160 = scalar_select %p157, %s158, %s159
      %p163 = pneg %p157
      %p164 = scmp.eq.s32.totalorder %s19, 3
      %p165 = por %p163, %p164
      %p166 = scmp.ne.s32.totalorder %s158, %s161
      %p167 = scmp.eq.s32.totalorder %s19, 0
      %p168 = por %p166, %p167
      %p169 = scmp.ne.s32.totalorder %s158, %s161
      %p170 = scmp.eq.s32.totalorder %s24, 3
      %p171 = por %p169, %p170
      %p172 = scmp.ne.s32.totalorder %s161, %s162
      %p173 = scmp.eq.s32.totalorder %s24, 0
      %p174 = por %p172, %p173
      %p175 = scmp.ne.s32.totalorder %s161, %s162
      %p176 = scmp.eq.s32.totalorder %s25, 3
      %p177 = por %p175, %p176
      %p179 = scmp.ne.s32.totalorder %s162, %s178
      %p180 = scmp.eq.s32.totalorder %s25, 0
      %p181 = por %p179, %p180
      %p182 = scmp.le.s32.totalorder 1, %s19
      %p183 = scmp.lt.s32.totalorder %s19, 5
      %p184 = pnand %p182, %p183
      %p185 = pneg %p184
      // Predicated region
      $region9: #{tpu_custom_call.1} parent=5 // pred_check
        _
      $region10: #{tpu_custom_call.1} parent=5 // pred_check_branch
        %187 = sbr.rel (%p184) target = $region12
      $region11: #{tpu_custom_call.1} parent=5 // pred_region
        %s188 = ssub.s32 %s19, 1
        // Predicated region
        $region13: #{tpu_custom_call.1} parent=11 // pred_check
          %p189 = pneg %p80
        $region14: #{tpu_custom_call.1} parent=11 // pred_check_branch
          %191 = sbr.rel (%p189) target = $region16
        $region15: #{tpu_custom_call.1} parent=11 // pred_region
          %s193 = ssub.s32 2048, 2048
          %194 = vsyncadd [#allocation7], %s193
          %s195 = sshll.u32 [#allocation6], 4
          %s196 = int_to_ptr.vmem [resolvable:$true] %s195
          %201 = dma.hbm_to_vmem [thread:$0]  %s1, 2048, %s196, [#allocation7], 64, 64, 4
        $region16: #{tpu_custom_call.1} parent=11 // pred_fallthru
          _
        // Predicated region
        $region17: #{tpu_custom_call.1} parent=11 // pred_check
          %p202 = pneg %p127
        $region18: #{tpu_custom_call.1} parent=11 // pred_check_branch
          %204 = sbr.rel (%p202) target = $region20
        $region19: #{tpu_custom_call.1} parent=11 // pred_region
          %s206 = ssub.s32 1024, 1024
          %207 = vsyncadd [#allocation7], %s206
          %s208 = sshll.u32 [#allocation9], 4
          %s209 = int_to_ptr.vmem [resolvable:$true] %s208
          %214 = dma.hbm_to_vmem [thread:$0]  %s3, 1024, %s209, [#allocation7], 64, 64, 4
        $region20: #{tpu_custom_call.1} parent=11 // pred_fallthru
          _
        // Predicated region
        $region21: #{tpu_custom_call.1} parent=11 // pred_check
          %p215 = pneg %p148
        $region22: #{tpu_custom_call.1} parent=11 // pred_check_branch
          %217 = sbr.rel (%p215) target = $region24
        $region23: #{tpu_custom_call.1} parent=11 // pred_region
          %s219 = ssub.s32 1024, 1024
          %220 = vsyncadd [#allocation11], %s219
          %s221 = sshll.u32 [#allocation10], 4
          %s222 = int_to_ptr.vmem [resolvable:$true] %s221
          %227 = dma.hbm_to_vmem [thread:$0]  %s4, 1024, %s222, [#allocation11], 64, 64, 4
        $region24: #{tpu_custom_call.1} parent=11 // pred_fallthru
          _
      $region12: #{tpu_custom_call.1} parent=5 // pred_fallthru
        _
      %p228 = scmp.lt.s32.totalorder %s19, 4
      // Predicated region
      $region25: #{tpu_custom_call.1} parent=5 // pred_check
        %p229 = pneg %p228
      $region26: #{tpu_custom_call.1} parent=5 // pred_check_branch
        %231 = sbr.rel (%p229) target = $region28
      $region27: #{tpu_custom_call.1} parent=5 // pred_region
        // Predicated region
        $region29: #{tpu_custom_call.1} parent=27 // pred_check
          %p232 = pneg %p53
        $region30: #{tpu_custom_call.1} parent=27 // pred_check_branch
          %234 = sbr.rel (%p232) target = $region32
        $region31: #{tpu_custom_call.1} parent=27 // pred_region
          %s235 = sand.u32 %s19, 1
          %s236 = scalar_lea.sflag [#allocation4], %s235
          %s237 = sand.u32 %s43, 1
          %s238 = smul.addr %s237, 64
          %s239 = scalar_lea.vmem [#allocation3], %s238
          %s240 = smul.u32 16, %s26
          %s242 = ssub.s32 1024, 1024
          %243 = vsyncadd %s236, %s242
          %s244 = smul.addr %s240, 2
          %s245 = sadd.s32 %s27, %s244
          %s246 = smul.addr %s245, 64
          %s247 = scalar_lea.hbm %s0, %s246
          %s248 = sshll.u32 %s239, 4
          %s249 = int_to_ptr.vmem [resolvable:$true] %s248
          %254 = dma.hbm_to_vmem [thread:$0]  %s247, 1024, %s249, %s236, 128, 64, 4
        $region32: #{tpu_custom_call.1} parent=27 // pred_fallthru
          _
        // Predicated region
        $region33: #{tpu_custom_call.1} parent=27 // pred_check
          %p255 = pneg %p100
        $region34: #{tpu_custom_call.1} parent=27 // pred_check_branch
          %257 = sbr.rel (%p255) target = $region36
        $region35: #{tpu_custom_call.1} parent=27 // pred_region
          %s258 = sand.u32 %s19, 1
          %s259 = scalar_lea.sflag [#allocation4], %s258
          %s260 = sand.u32 %s90, 1
          %s261 = smul.addr %s260, 64
          %s262 = scalar_lea.vmem [#allocation8], %s261
          %s263 = smul.u32 16, %s26
          %s265 = ssub.s32 1024, 1024
          %266 = vsyncadd %s259, %s265
          %s267 = smul.addr %s263, 64
          %s268 = scalar_lea.hbm %s2, %s267
          %s269 = sshll.u32 %s262, 4
          %s270 = int_to_ptr.vmem [resolvable:$true] %s269
          %275 = dma.hbm_to_vmem [thread:$0]  %s268, 1024, %s270, %s259, 64, 64, 4
        $region36: #{tpu_custom_call.1} parent=27 // pred_fallthru
          _
      $region28: #{tpu_custom_call.1} parent=5 // pred_fallthru
        _
      %p276 = scmp.le.s32.totalorder 1, %s19
      %p277 = scmp.lt.s32.totalorder %s19, 5
      %p278 = pnand %p276, %p277
      %p279 = pneg %p278
      // Predicated region
      $region37: #{tpu_custom_call.1} parent=5 // pred_check
        _
      $region38: #{tpu_custom_call.1} parent=5 // pred_check_branch
        %281 = sbr.rel (%p278) target = $region40
      $region39: #{tpu_custom_call.1} parent=5 // pred_region
        %s282 = ssub.s32 %s19, 1
        %s283 = sand.u32 %s24, 1
        %s284 = scalar_lea.sflag [#allocation4], %s283
        %s285 = sand.u32 %s46, 1
        %s286 = smul.addr %s285, 64
        %s287 = scalar_lea.vmem [#allocation3], %s286
        // Predicated region
        $region41: #{tpu_custom_call.1} parent=39 // pred_check
          %p288 = pneg %p59
        $region42: #{tpu_custom_call.1} parent=39 // pred_check_branch
          %290 = sbr.rel (%p288) target = $region44
        $region43: #{tpu_custom_call.1} parent=39 // pred_region
          %291 = dma.done %s284, 1024
        $region44: #{tpu_custom_call.1} parent=39 // pred_fallthru
          _
        // Predicated region
        $region45: #{tpu_custom_call.1} parent=39 // pred_check
          %p292 = pneg %p80
        $region46: #{tpu_custom_call.1} parent=39 // pred_check_branch
          %294 = sbr.rel (%p292) target = $region48
        $region47: #{tpu_custom_call.1} parent=39 // pred_region
          %295 = dma.done [#allocation7], 2048
        $region48: #{tpu_custom_call.1} parent=39 // pred_fallthru
          _
        %s296 = sand.u32 %s24, 1
        %s297 = scalar_lea.sflag [#allocation4], %s296
        %s298 = sand.u32 %s93, 1
        %s299 = smul.addr %s298, 64
        %s300 = scalar_lea.vmem [#allocation8], %s299
        // Predicated region
        $region49: #{tpu_custom_call.1} parent=39 // pred_check
          %p301 = pneg %p106
        $region50: #{tpu_custom_call.1} parent=39 // pred_check_branch
          %303 = sbr.rel (%p301) target = $region52
        $region51: #{tpu_custom_call.1} parent=39 // pred_region
          %304 = dma.done %s297, 1024
        $region52: #{tpu_custom_call.1} parent=39 // pred_fallthru
          _
        // Predicated region
        $region53: #{tpu_custom_call.1} parent=39 // pred_check
          %p305 = pneg %p127
        $region54: #{tpu_custom_call.1} parent=39 // pred_check_branch
          %307 = sbr.rel (%p305) target = $region56
        $region55: #{tpu_custom_call.1} parent=39 // pred_region
          %308 = dma.done [#allocation7], 1024
        $region56: #{tpu_custom_call.1} parent=39 // pred_fallthru
          _
        // Predicated region
        $region57: #{tpu_custom_call.1} parent=39 // pred_check
          %p309 = pneg %p148
        $region58: #{tpu_custom_call.1} parent=39 // pred_check_branch
          %311 = sbr.rel (%p309) target = $region60
        $region59: #{tpu_custom_call.1} parent=39 // pred_region
          %312 = dma.done [#allocation11], 1024
        $region60: #{tpu_custom_call.1} parent=39 // pred_fallthru
          _
        %s313 = sand.u32 %s24, 1
        %s314 = scalar_lea.sflag [#allocation4], %s313
        %s315 = sand.u32 %s46, 1
        %s316 = smul.addr %s315, 64
        %s317 = scalar_lea.vmem [#allocation3], %s316
        %p318 = pneg %p59
        %p319 = pneg %p56
        %p320 = pneg %p80
        %p321 = pneg %p77
        %s322 = sand.u32 %s24, 1
        %s323 = scalar_lea.sflag [#allocation4], %s322
        %s324 = sand.u32 %s93, 1
        %s325 = smul.addr %s324, 64
        %s326 = scalar_lea.vmem [#allocation8], %s325
        %p327 = pneg %p106
        %p328 = pneg %p103
        %p329 = pneg %p127
        %p330 = pneg %p124
        %p331 = pneg %p148
        %p332 = pneg %p145
        %p333 = pneg %p174
        %p334 = pneg %p171
        %s335 = sand.u32 %s161, 1
        %s336 = scalar_lea.sflag [#allocation5], %s335
        %s337 = sand.u32 %s161, 1
        %s338 = smul.addr %s337, 128
        %s339 = scalar_lea.vmem [#allocation12], %s338
        %s340 = smul.u32 16, %s28
        %s341 = smul.u32 16, %s28
        %s342 = smul.u32 16, %s28
        %p344 = scmp.eq.s32.totalorder %s29, 0
        // Predicated region
        $region61: #{tpu_custom_call.1} parent=39 // pred_check
          %p345 = pneg %p344
        $region62: #{tpu_custom_call.1} parent=39 // pred_check_branch
          %347 = sbr.rel (%p345) target = $region64
        $region63: #{tpu_custom_call.1} parent=39 // pred_region
          %348 = vst [vmem:[#allocation2] sm:$0xff] 0.0
          %349 = vst [vmem:[#allocation2 + $0x8] sm:$0xff] 0.0
          %350 = vst [vmem:[#allocation2 + $0x10] sm:$0xff] 0.0
          %351 = vst [vmem:[#allocation2 + $0x18] sm:$0xff] 0.0
          %352 = vst [vmem:[#allocation2 + $0x20] sm:$0xff] 0.0
          %353 = vst [vmem:[#allocation2 + $0x28] sm:$0xff] 0.0
          %354 = vst [vmem:[#allocation2 + $0x30] sm:$0xff] 0.0
          %355 = vst [vmem:[#allocation2 + $0x38] sm:$0xff] 0.0
          %356 = vst [vmem:[#allocation2 + $0x40] sm:$0xff] 0.0
          %357 = vst [vmem:[#allocation2 + $0x48] sm:$0xff] 0.0
          %358 = vst [vmem:[#allocation2 + $0x50] sm:$0xff] 0.0
          %359 = vst [vmem:[#allocation2 + $0x58] sm:$0xff] 0.0
          %360 = vst [vmem:[#allocation2 + $0x60] sm:$0xff] 0.0
          %361 = vst [vmem:[#allocation2 + $0x68] sm:$0xff] 0.0
          %362 = vst [vmem:[#allocation2 + $0x70] sm:$0xff] 0.0
          %363 = vst [vmem:[#allocation2 + $0x78] sm:$0xff] 0.0
        $region64: #{tpu_custom_call.1} parent=39 // pred_fallthru
          _
        %s364 = smul.u32 %s29, 128
        %s365 = sshra.s32 %s364, 3
        %s366 = sand.u32 %s364, 7
        %s367 = smul.addr %s365, 4
        %s368 = scalar_lea.vmem [#allocation6], %s367
        %v369 = vld [vmem:[%s368] sm:$0xf]
        %v370 = vld [vmem:[%s368 + $0x4] sm:$0xf]
        %v371 = vld [vmem:[%s368 + $0x8] sm:$0xf]
        %v372 = vld [vmem:[%s368 + $0xc] sm:$0xf]
        %v373 = vld [vmem:[%s368 + $0x10] sm:$0xf]
        %v374 = vld [vmem:[%s368 + $0x14] sm:$0xf]
        %v375 = vld [vmem:[%s368 + $0x18] sm:$0xf]
        %v376 = vld [vmem:[%s368 + $0x1c] sm:$0xf]
        %v377 = vld [vmem:[%s368 + $0x20] sm:$0xf]
        %v378 = vld [vmem:[%s368 + $0x24] sm:$0xf]
        %v379 = vld [vmem:[%s368 + $0x28] sm:$0xf]
        %v380 = vld [vmem:[%s368 + $0x2c] sm:$0xf]
        %v381 = vld [vmem:[%s368 + $0x30] sm:$0xf]
        %v382 = vld [vmem:[%s368 + $0x34] sm:$0xf]
        %v383 = vld [vmem:[%s368 + $0x38] sm:$0xf]
        %v384 = vld [vmem:[%s368 + $0x3c] sm:$0xf]
        %v385 = vld [vmem:[#allocation2] sm:$0xff]
        %v386 = vld [vmem:[#allocation2 + $0x8] sm:$0xff]
        %v387 = vld [vmem:[#allocation2 + $0x10] sm:$0xff]
        %v388 = vld [vmem:[#allocation2 + $0x18] sm:$0xff]
        %v389 = vld [vmem:[#allocation2 + $0x20] sm:$0xff]
        %v390 = vld [vmem:[#allocation2 + $0x28] sm:$0xff]
        %v391 = vld [vmem:[#allocation2 + $0x30] sm:$0xff]
        %v392 = vld [vmem:[#allocation2 + $0x38] sm:$0xff]
        %v393 = vld [vmem:[#allocation2 + $0x40] sm:$0xff]
        %v394 = vld [vmem:[#allocation2 + $0x48] sm:$0xff]
        %v395 = vld [vmem:[#allocation2 + $0x50] sm:$0xff]
        %v396 = vld [vmem:[#allocation2 + $0x58] sm:$0xff]
        %v397 = vld [vmem:[#allocation2 + $0x60] sm:$0xff]
        %v398 = vld [vmem:[#allocation2 + $0x68] sm:$0xff]
        %v399 = vld [vmem:[#allocation2 + $0x70] sm:$0xff]
        %v400 = vld [vmem:[#allocation2 + $0x78] sm:$0xff]
        %v401 = vld [vmem:[%s287] sm:$0xf]
        %v402 = vld [vmem:[%s287 + $0x4] sm:$0xf]
        %v403 = vld [vmem:[%s287 + $0x8] sm:$0xf]
        %v404 = vld [vmem:[%s287 + $0xc] sm:$0xf]
        %v405 = vld [vmem:[%s287 + $0x10] sm:$0xf]
        %v406 = vld [vmem:[%s287 + $0x14] sm:$0xf]
        %v407 = vld [vmem:[%s287 + $0x18] sm:$0xf]
        %v408 = vld [vmem:[%s287 + $0x1c] sm:$0xf]
        %v409 = vld [vmem:[%s287 + $0x20] sm:$0xf]
        %v410 = vld [vmem:[%s287 + $0x24] sm:$0xf]
        %v411 = vld [vmem:[%s287 + $0x28] sm:$0xf]
        %v412 = vld [vmem:[%s287 + $0x2c] sm:$0xf]
        %v413 = vld [vmem:[%s287 + $0x30] sm:$0xf]
        %v414 = vld [vmem:[%s287 + $0x34] sm:$0xf]
        %v415 = vld [vmem:[%s287 + $0x38] sm:$0xf]
        %v416 = vld [vmem:[%s287 + $0x3c] sm:$0xf]
        %v433 = vunpack.c.l.b16 %v401
        %v434 = vunpack.c.l.b16 %v402
        %v435 = vunpack.c.l.b16 %v403
        %v436 = vunpack.c.l.b16 %v404
        %v437 = vunpack.c.l.b16 %v405
        %v438 = vunpack.c.l.b16 %v406
        %v439 = vunpack.c.l.b16 %v407
        %v440 = vunpack.c.l.b16 %v408
        %v441 = vunpack.c.l.b16 %v409
        %v442 = vunpack.c.l.b16 %v410
        %v443 = vunpack.c.l.b16 %v411
        %v444 = vunpack.c.l.b16 %v412
        %v445 = vunpack.c.l.b16 %v413
        %v446 = vunpack.c.l.b16 %v414
        %v447 = vunpack.c.l.b16 %v415
        %v448 = vunpack.c.l.b16 %v416
        %v449 = vpack.c.b16 %v434, %v433
        %v450 = vpack.c.b16 %v436, %v435
        %v451 = vpack.c.b16 %v438, %v437
        %v452 = vpack.c.b16 %v440, %v439
        %v453 = vpack.c.b16 %v442, %v441
        %v454 = vpack.c.b16 %v444, %v443
        %v455 = vpack.c.b16 %v446, %v445
        %v456 = vpack.c.b16 %v448, %v447
        %v481 = vunpack.c.l.b16 %v369
        %v482 = vunpack.c.l.b16 %v370
        %v483 = vunpack.c.l.b16 %v371
        %v484 = vunpack.c.l.b16 %v372
        %v485 = vunpack.c.l.b16 %v373
        %v486 = vunpack.c.l.b16 %v374
        %v487 = vunpack.c.l.b16 %v375
        %v488 = vunpack.c.l.b16 %v376
        %v489 = vunpack.c.l.b16 %v377
        %v490 = vunpack.c.l.b16 %v378
        %v491 = vunpack.c.l.b16 %v379
        %v492 = vunpack.c.l.b16 %v380
        %v493 = vunpack.c.l.b16 %v381
        %v494 = vunpack.c.l.b16 %v382
        %v495 = vunpack.c.l.b16 %v383
        %v496 = vunpack.c.l.b16 %v384
        %v497 = vpack.c.b16 %v482, %v481
        %v498 = vpack.c.b16 %v484, %v483
        %v499 = vpack.c.b16 %v486, %v485
        %v500 = vpack.c.b16 %v488, %v487
        %v501 = vpack.c.b16 %v490, %v489
        %v502 = vpack.c.b16 %v492, %v491
        %v503 = vpack.c.b16 %v494, %v493
        %v504 = vpack.c.b16 %v496, %v495
        %513 = vmatprep.subr.bf16.mxu0 0
        %514 = vmatpush1.bf16.msra.mxu0 %v497
        %515 = vmatprep.subr.bf16.mxu0 0
        %516 = vmatpush1.bf16.msra.mxu0 %v498
        %517 = vmatprep.subr.bf16.mxu0 0
        %518 = vmatpush1.bf16.msra.mxu0 %v499
        %519 = vmatprep.subr.bf16.mxu0 0
        %520 = vmatpush1.bf16.msra.mxu0 %v500
        %521 = vmatprep.subr.bf16.mxu0 0
        %522 = vmatpush1.bf16.msra.mxu0 %v501
        %523 = vmatprep.subr.bf16.mxu0 0
        %524 = vmatpush1.bf16.msra.mxu0 %v502
        %525 = vmatprep.subr.bf16.mxu0 0
        %526 = vmatpush1.bf16.msra.mxu0 %v503
        %527 = vmatprep.subr.bf16.mxu0 0
        %528 = vmatpush1.bf16.msra.mxu0 %v504
        %529 = vmatprep.subr.bf16.mxu0 0
        %530 = vmatpush1.bf16.msra.mxu0 0
        %531 = vmatprep.subr.bf16.mxu0 0
        %532 = vmatpush1.bf16.msra.mxu0 0
        %533 = vmatprep.subr.bf16.mxu0 0
        %534 = vmatpush1.bf16.msra.mxu0 0
        %535 = vmatprep.subr.bf16.mxu0 0
        %536 = vmatpush1.bf16.msra.mxu0 0
        %537 = vmatprep.subr.bf16.mxu0 0
        %538 = vmatpush1.bf16.msra.mxu0 0
        %539 = vmatprep.subr.bf16.mxu0 0
        %540 = vmatpush1.bf16.msra.mxu0 0
        %541 = vmatprep.subr.bf16.mxu0 0
        %542 = vmatpush1.bf16.msra.mxu0 0
        %543 = vmatprep.subr.bf16.mxu0 0
        %544 = vmatpush1.bf16.msra.mxu0 0
        %545 = vmatprep.mubr.bf16.mxu0 0
        %546 = vmatmul.mubr.bf16.gmra.mrb[0].mxu0 %v449
        %v547 = vpop.f32.mrb[0].mxu0
        %v548 = vadd.f32 0.0, %v547
        %v549 = vpop.f32.mrb[0].mxu0
        %v550 = vpop.f32.mrb[0].mxu0
        %v551 = vadd.f32 0.0, %v550
        %v552 = vpop.f32.mrb[0].mxu0
        %553 = vmatprep.mubr.bf16.mxu0 0
        %554 = vmatmul.mubr.bf16.gmra.mrb[0].mxu0 %v450
        %v555 = vpop.f32.mrb[0].mxu0
        %v556 = vadd.f32 0.0, %v555
        %v557 = vpop.f32.mrb[0].mxu0
        %v558 = vpop.f32.mrb[0].mxu0
        %v559 = vadd.f32 0.0, %v558
        %v560 = vpop.f32.mrb[0].mxu0
        %561 = vmatprep.mubr.bf16.mxu0 0
        %562 = vmatmul.mubr.bf16.gmra.mrb[0].mxu0 %v451
        %v563 = vpop.f32.mrb[0].mxu0
        %v564 = vadd.f32 0.0, %v563
        %v565 = vpop.f32.mrb[0].mxu0
        %v566 = vpop.f32.mrb[0].mxu0
        %v567 = vadd.f32 0.0, %v566
        %v568 = vpop.f32.mrb[0].mxu0
        %569 = vmatprep.mubr.bf16.mxu0 0
        %570 = vmatmul.mubr.bf16.gmra.mrb[0].mxu0 %v452
        %v571 = vpop.f32.mrb[0].mxu0
        %v572 = vadd.f32 0.0, %v571
        %v573 = vpop.f32.mrb[0].mxu0
        %v574 = vpop.f32.mrb[0].mxu0
        %v575 = vadd.f32 0.0, %v574
        %v576 = vpop.f32.mrb[0].mxu0
        %577 = vmatprep.mubr.bf16.mxu0 0
        %578 = vmatmul.mubr.bf16.gmra.mrb[0].mxu0 %v453
        %v579 = vpop.f32.mrb[0].mxu0
        %v580 = vadd.f32 0.0, %v579
        %v581 = vpop.f32.mrb[0].mxu0
        %v582 = vpop.f32.mrb[0].mxu0
        %v583 = vadd.f32 0.0, %v582
        %v584 = vpop.f32.mrb[0].mxu0
        %585 = vmatprep.mubr.bf16.mxu0 0
        %586 = vmatmul.mubr.bf16.gmra.mrb[0].mxu0 %v454
        %v587 = vpop.f32.mrb[0].mxu0
        %v588 = vadd.f32 0.0, %v587
        %v589 = vpop.f32.mrb[0].mxu0
        %v590 = vpop.f32.mrb[0].mxu0
        %v591 = vadd.f32 0.0, %v590
        %v592 = vpop.f32.mrb[0].mxu0
        %593 = vmatprep.mubr.bf16.mxu0 0
        %594 = vmatmul.mubr.bf16.gmra.mrb[0].mxu0 %v455
        %v595 = vpop.f32.mrb[0].mxu0
        %v596 = vadd.f32 0.0, %v595
        %v597 = vpop.f32.mrb[0].mxu0
        %v598 = vpop.f32.mrb[0].mxu0
        %v599 = vadd.f32 0.0, %v598
        %v600 = vpop.f32.mrb[0].mxu0
        %601 = vmatprep.mubr.bf16.mxu0 0
        %602 = vmatmul.mubr.bf16.gmra.mrb[0].mxu0 %v456
        %v603 = vpop.f32.mrb[0].mxu0
        %v604 = vadd.f32 0.0, %v603
        %v605 = vpop.f32.mrb[0].mxu0
        %v606 = vpop.f32.mrb[0].mxu0
        %v607 = vadd.f32 0.0, %v606
        %v608 = vpop.f32.mrb[0].mxu0
        %609 = vdwg.mxu0
        %v610 = vadd.f32 %v385, %v548
        %v611 = vadd.f32 %v386, %v551
        %v612 = vadd.f32 %v387, %v556
        %v613 = vadd.f32 %v388, %v559
        %v614 = vadd.f32 %v389, %v564
        %v615 = vadd.f32 %v390, %v567
        %v616 = vadd.f32 %v391, %v572
        %v617 = vadd.f32 %v392, %v575
        %v618 = vadd.f32 %v393, %v580
        %v619 = vadd.f32 %v394, %v583
        %v620 = vadd.f32 %v395, %v588
        %v621 = vadd.f32 %v396, %v591
        %v622 = vadd.f32 %v397, %v596
        %v623 = vadd.f32 %v398, %v599
        %v624 = vadd.f32 %v399, %v604
        %v625 = vadd.f32 %v400, %v607
        %626 = vst [vmem:[#allocation2] sm:$0xff] %v610
        %627 = vst [vmem:[#allocation2 + $0x8] sm:$0xff] %v611
        %628 = vst [vmem:[#allocation2 + $0x10] sm:$0xff] %v612
        %629 = vst [vmem:[#allocation2 + $0x18] sm:$0xff] %v613
        %630 = vst [vmem:[#allocation2 + $0x20] sm:$0xff] %v614
        %631 = vst [vmem:[#allocation2 + $0x28] sm:$0xff] %v615
        %632 = vst [vmem:[#allocation2 + $0x30] sm:$0xff] %v616
        %633 = vst [vmem:[#allocation2 + $0x38] sm:$0xff] %v617
        %634 = vst [vmem:[#allocation2 + $0x40] sm:$0xff] %v618
        %635 = vst [vmem:[#allocation2 + $0x48] sm:$0xff] %v619
        %636 = vst [vmem:[#allocation2 + $0x50] sm:$0xff] %v620
        %637 = vst [vmem:[#allocation2 + $0x58] sm:$0xff] %v621
        %638 = vst [vmem:[#allocation2 + $0x60] sm:$0xff] %v622
        %639 = vst [vmem:[#allocation2 + $0x68] sm:$0xff] %v623
        %640 = vst [vmem:[#allocation2 + $0x70] sm:$0xff] %v624
        %641 = vst [vmem:[#allocation2 + $0x78] sm:$0xff] %v625
        %p642 = scmp.eq.s32.totalorder %s29, 1
        // Predicated region
        $region65: #{tpu_custom_call.1} parent=39 // pred_check
          %p643 = pneg %p642
        $region66: #{tpu_custom_call.1} parent=39 // pred_check_branch
          %645 = sbr.rel (%p643) target = $region68
        $region67: #{tpu_custom_call.1} parent=39 // pred_region
          %v646 = vld [vmem:[#allocation2] sm:$0xff]
          %v647 = vld [vmem:[#allocation2 + $0x8] sm:$0xff]
          %v648 = vld [vmem:[#allocation2 + $0x10] sm:$0xff]
          %v649 = vld [vmem:[#allocation2 + $0x18] sm:$0xff]
          %v650 = vld [vmem:[#allocation2 + $0x20] sm:$0xff]
          %v651 = vld [vmem:[#allocation2 + $0x28] sm:$0xff]
          %v652 = vld [vmem:[#allocation2 + $0x30] sm:$0xff]
          %v653 = vld [vmem:[#allocation2 + $0x38] sm:$0xff]
          %v654 = vld [vmem:[#allocation2 + $0x40] sm:$0xff]
          %v655 = vld [vmem:[#allocation2 + $0x48] sm:$0xff]
          %v656 = vld [vmem:[#allocation2 + $0x50] sm:$0xff]
          %v657 = vld [vmem:[#allocation2 + $0x58] sm:$0xff]
          %v658 = vld [vmem:[#allocation2 + $0x60] sm:$0xff]
          %v659 = vld [vmem:[#allocation2 + $0x68] sm:$0xff]
          %v660 = vld [vmem:[#allocation2 + $0x70] sm:$0xff]
          %v661 = vld [vmem:[#allocation2 + $0x78] sm:$0xff]
          %v662 = vpack.c.bf16 %v647, %v646
          %v663 = vpack.c.bf16 %v649, %v648
          %v664 = vpack.c.bf16 %v651, %v650
          %v665 = vpack.c.bf16 %v653, %v652
          %v666 = vpack.c.bf16 %v655, %v654
          %v667 = vpack.c.bf16 %v657, %v656
          %v668 = vpack.c.bf16 %v659, %v658
          %v669 = vpack.c.bf16 %v661, %v660
          %v670 = vld [vmem:[#allocation9] sm:$0xf]
          %v671 = vld [vmem:[#allocation9 + $0x4] sm:$0xf]
          %v672 = vld [vmem:[#allocation9 + $0x8] sm:$0xf]
          %v673 = vld [vmem:[#allocation9 + $0xc] sm:$0xf]
          %v674 = vld [vmem:[#allocation9 + $0x10] sm:$0xf]
          %v675 = vld [vmem:[#allocation9 + $0x14] sm:$0xf]
          %v676 = vld [vmem:[#allocation9 + $0x18] sm:$0xf]
          %v677 = vld [vmem:[#allocation9 + $0x1c] sm:$0xf]
          %v678 = vld [vmem:[#allocation9 + $0x20] sm:$0xf]
          %v679 = vld [vmem:[#allocation9 + $0x24] sm:$0xf]
          %v680 = vld [vmem:[#allocation9 + $0x28] sm:$0xf]
          %v681 = vld [vmem:[#allocation9 + $0x2c] sm:$0xf]
          %v682 = vld [vmem:[#allocation9 + $0x30] sm:$0xf]
          %v683 = vld [vmem:[#allocation9 + $0x34] sm:$0xf]
          %v684 = vld [vmem:[#allocation9 + $0x38] sm:$0xf]
          %v685 = vld [vmem:[#allocation9 + $0x3c] sm:$0xf]
          %v686 = vld [vmem:[%s300] sm:$0xf]
          %v687 = vld [vmem:[%s300 + $0x4] sm:$0xf]
          %v688 = vld [vmem:[%s300 + $0x8] sm:$0xf]
          %v689 = vld [vmem:[%s300 + $0xc] sm:$0xf]
          %v690 = vld [vmem:[%s300 + $0x10] sm:$0xf]
          %v691 = vld [vmem:[%s300 + $0x14] sm:$0xf]
          %v692 = vld [vmem:[%s300 + $0x18] sm:$0xf]
          %v693 = vld [vmem:[%s300 + $0x1c] sm:$0xf]
          %v694 = vld [vmem:[%s300 + $0x20] sm:$0xf]
          %v695 = vld [vmem:[%s300 + $0x24] sm:$0xf]
          %v696 = vld [vmem:[%s300 + $0x28] sm:$0xf]
          %v697 = vld [vmem:[%s300 + $0x2c] sm:$0xf]
          %v698 = vld [vmem:[%s300 + $0x30] sm:$0xf]
          %v699 = vld [vmem:[%s300 + $0x34] sm:$0xf]
          %v700 = vld [vmem:[%s300 + $0x38] sm:$0xf]
          %v701 = vld [vmem:[%s300 + $0x3c] sm:$0xf]
          %v702 = vld [vmem:[#allocation10] sm:$0xf]
          %v703 = vld [vmem:[#allocation10 + $0x4] sm:$0xf]
          %v704 = vld [vmem:[#allocation10 + $0x8] sm:$0xf]
          %v705 = vld [vmem:[#allocation10 + $0xc] sm:$0xf]
          %v706 = vld [vmem:[#allocation10 + $0x10] sm:$0xf]
          %v707 = vld [vmem:[#allocation10 + $0x14] sm:$0xf]
          %v708 = vld [vmem:[#allocation10 + $0x18] sm:$0xf]
          %v709 = vld [vmem:[#allocation10 + $0x1c] sm:$0xf]
          %v710 = vld [vmem:[#allocation10 + $0x20] sm:$0xf]
          %v711 = vld [vmem:[#allocation10 + $0x24] sm:$0xf]
          %v712 = vld [vmem:[#allocation10 + $0x28] sm:$0xf]
          %v713 = vld [vmem:[#allocation10 + $0x2c] sm:$0xf]
          %v714 = vld [vmem:[#allocation10 + $0x30] sm:$0xf]
          %v715 = vld [vmem:[#allocation10 + $0x34] sm:$0xf]
          %v716 = vld [vmem:[#allocation10 + $0x38] sm:$0xf]
          %v717 = vld [vmem:[#allocation10 + $0x3c] sm:$0xf]
          %v734 = vunpack.c.l.b16 %v686
          %v735 = vunpack.c.l.b16 %v687
          %v736 = vunpack.c.l.b16 %v688
          %v737 = vunpack.c.l.b16 %v689
          %v738 = vunpack.c.l.b16 %v690
          %v739 = vunpack.c.l.b16 %v691
          %v740 = vunpack.c.l.b16 %v692
          %v741 = vunpack.c.l.b16 %v693
          %v742 = vunpack.c.l.b16 %v694
          %v743 = vunpack.c.l.b16 %v695
          %v744 = vunpack.c.l.b16 %v696
          %v745 = vunpack.c.l.b16 %v697
          %v746 = vunpack.c.l.b16 %v698
          %v747 = vunpack.c.l.b16 %v699
          %v748 = vunpack.c.l.b16 %v700
          %v749 = vunpack.c.l.b16 %v701
          %v750 = vpack.c.b16 %v735, %v734
          %v751 = vpack.c.b16 %v737, %v736
          %v752 = vpack.c.b16 %v739, %v738
          %v753 = vpack.c.b16 %v741, %v740
          %v754 = vpack.c.b16 %v743, %v742
          %v755 = vpack.c.b16 %v745, %v744
          %v756 = vpack.c.b16 %v747, %v746
          %v757 = vpack.c.b16 %v749, %v748
          %v782 = vunpack.c.l.b16 %v702
          %v783 = vunpack.c.l.b16 %v703
          %v784 = vunpack.c.l.b16 %v704
          %v785 = vunpack.c.l.b16 %v705
          %v786 = vunpack.c.l.b16 %v706
          %v787 = vunpack.c.l.b16 %v707
          %v788 = vunpack.c.l.b16 %v708
          %v789 = vunpack.c.l.b16 %v709
          %v790 = vunpack.c.l.b16 %v710
          %v791 = vunpack.c.l.b16 %v711
          %v792 = vunpack.c.l.b16 %v712
          %v793 = vunpack.c.l.b16 %v713
          %v794 = vunpack.c.l.b16 %v714
          %v795 = vunpack.c.l.b16 %v715
          %v796 = vunpack.c.l.b16 %v716
          %v797 = vunpack.c.l.b16 %v717
          %v798 = vpack.c.b16 %v783, %v782
          %v799 = vpack.c.b16 %v785, %v784
          %v800 = vpack.c.b16 %v787, %v786
          %v801 = vpack.c.b16 %v789, %v788
          %v802 = vpack.c.b16 %v791, %v790
          %v803 = vpack.c.b16 %v793, %v792
          %v804 = vpack.c.b16 %v795, %v794
          %v805 = vpack.c.b16 %v797, %v796
          %814 = vmatprep.subr.bf16.mxu0 0
          %815 = vmatpush1.bf16.msra.mxu0 %v798
          %816 = vmatprep.subr.bf16.mxu0 0
          %817 = vmatpush1.bf16.msra.mxu0 %v799
          %818 = vmatprep.subr.bf16.mxu0 0
          %819 = vmatpush1.bf16.msra.mxu0 %v800
          %820 = vmatprep.subr.bf16.mxu0 0
          %821 = vmatpush1.bf16.msra.mxu0 %v801
          %822 = vmatprep.subr.bf16.mxu0 0
          %823 = vmatpush1.bf16.msra.mxu0 %v802
          %824 = vmatprep.subr.bf16.mxu0 0
          %825 = vmatpush1.bf16.msra.mxu0 %v803
          %826 = vmatprep.subr.bf16.mxu0 0
          %827 = vmatpush1.bf16.msra.mxu0 %v804
          %828 = vmatprep.subr.bf16.mxu0 0
          %829 = vmatpush1.bf16.msra.mxu0 %v805
          %830 = vmatprep.subr.bf16.mxu0 0
          %831 = vmatpush1.bf16.msra.mxu0 0
          %832 = vmatprep.subr.bf16.mxu0 0
          %833 = vmatpush1.bf16.msra.mxu0 0
          %834 = vmatprep.subr.bf16.mxu0 0
          %835 = vmatpush1.bf16.msra.mxu0 0
          %836 = vmatprep.subr.bf16.mxu0 0
          %837 = vmatpush1.bf16.msra.mxu0 0
          %838 = vmatprep.subr.bf16.mxu0 0
          %839 = vmatpush1.bf16.msra.mxu0 0
          %840 = vmatprep.subr.bf16.mxu0 0
          %841 = vmatpush1.bf16.msra.mxu0 0
          %842 = vmatprep.subr.bf16.mxu0 0
          %843 = vmatpush1.bf16.msra.mxu0 0
          %844 = vmatprep.subr.bf16.mxu0 0
          %845 = vmatpush1.bf16.msra.mxu0 0
          %846 = vmatprep.mubr.bf16.mxu0 0
          %847 = vmatmul.mubr.bf16.gmra.mrb[0].mxu0 %v750
          %v848 = vpop.f32.mrb[0].mxu0
          %v849 = vadd.f32 0.0, %v848
          %v850 = vpop.f32.mrb[0].mxu0
          %v851 = vpop.f32.mrb[0].mxu0
          %v852 = vadd.f32 0.0, %v851
          %v853 = vpop.f32.mrb[0].mxu0
          %854 = vmatprep.mubr.bf16.mxu0 0
          %855 = vmatmul.mubr.bf16.gmra.mrb[0].mxu0 %v751
          %v856 = vpop.f32.mrb[0].mxu0
          %v857 = vadd.f32 0.0, %v856
          %v858 = vpop.f32.mrb[0].mxu0
          %v859 = vpop.f32.mrb[0].mxu0
          %v860 = vadd.f32 0.0, %v859
          %v861 = vpop.f32.mrb[0].mxu0
          %862 = vmatprep.mubr.bf16.mxu0 0
          %863 = vmatmul.mubr.bf16.gmra.mrb[0].mxu0 %v752
          %v864 = vpop.f32.mrb[0].mxu0
          %v865 = vadd.f32 0.0, %v864
          %v866 = vpop.f32.mrb[0].mxu0
          %v867 = vpop.f32.mrb[0].mxu0
          %v868 = vadd.f32 0.0, %v867
          %v869 = vpop.f32.mrb[0].mxu0
          %870 = vmatprep.mubr.bf16.mxu0 0
          %871 = vmatmul.mubr.bf16.gmra.mrb[0].mxu0 %v753
          %v872 = vpop.f32.mrb[0].mxu0
          %v873 = vadd.f32 0.0, %v872
          %v874 = vpop.f32.mrb[0].mxu0
          %v875 = vpop.f32.mrb[0].mxu0
          %v876 = vadd.f32 0.0, %v875
          %v877 = vpop.f32.mrb[0].mxu0
          %878 = vmatprep.mubr.bf16.mxu0 0
          %879 = vmatmul.mubr.bf16.gmra.mrb[0].mxu0 %v754
          %v880 = vpop.f32.mrb[0].mxu0
          %v881 = vadd.f32 0.0, %v880
          %v882 = vpop.f32.mrb[0].mxu0
          %v883 = vpop.f32.mrb[0].mxu0
          %v884 = vadd.f32 0.0, %v883
          %v885 = vpop.f32.mrb[0].mxu0
          %886 = vmatprep.mubr.bf16.mxu0 0
          %887 = vmatmul.mubr.bf16.gmra.mrb[0].mxu0 %v755
          %v888 = vpop.f32.mrb[0].mxu0
          %v889 = vadd.f32 0.0, %v888
          %v890 = vpop.f32.mrb[0].mxu0
          %v891 = vpop.f32.mrb[0].mxu0
          %v892 = vadd.f32 0.0, %v891
          %v893 = vpop.f32.mrb[0].mxu0
          %894 = vmatprep.mubr.bf16.mxu0 0
          %895 = vmatmul.mubr.bf16.gmra.mrb[0].mxu0 %v756
          %v896 = vpop.f32.mrb[0].mxu0
          %v897 = vadd.f32 0.0, %v896
          %v898 = vpop.f32.mrb[0].mxu0
          %v899 = vpop.f32.mrb[0].mxu0
          %v900 = vadd.f32 0.0, %v899
          %v901 = vpop.f32.mrb[0].mxu0
          %902 = vmatprep.mubr.bf16.mxu0 0
          %903 = vmatmul.mubr.bf16.gmra.mrb[0].mxu0 %v757
          %v904 = vpop.f32.mrb[0].mxu0
          %v905 = vadd.f32 0.0, %v904
          %v906 = vpop.f32.mrb[0].mxu0
          %v907 = vpop.f32.mrb[0].mxu0
          %v908 = vadd.f32 0.0, %v907
          %v909 = vpop.f32.mrb[0].mxu0
          %910 = vdwg.mxu0
          %v927 = vunpack.c.l.b16 %v670
          %v928 = vunpack.c.l.b16 %v671
          %v929 = vunpack.c.l.b16 %v672
          %v930 = vunpack.c.l.b16 %v673
          %v931 = vunpack.c.l.b16 %v674
          %v932 = vunpack.c.l.b16 %v675
          %v933 = vunpack.c.l.b16 %v676
          %v934 = vunpack.c.l.b16 %v677
          %v935 = vunpack.c.l.b16 %v678
          %v936 = vunpack.c.l.b16 %v679
          %v937 = vunpack.c.l.b16 %v680
          %v938 = vunpack.c.l.b16 %v681
          %v939 = vunpack.c.l.b16 %v682
          %v940 = vunpack.c.l.b16 %v683
          %v941 = vunpack.c.l.b16 %v684
          %v942 = vunpack.c.l.b16 %v685
          %v943 = vpack.c.b16 %v928, %v927
          %v944 = vpack.c.b16 %v930, %v929
          %v945 = vpack.c.b16 %v932, %v931
          %v946 = vpack.c.b16 %v934, %v933
          %v947 = vpack.c.b16 %v936, %v935
          %v948 = vpack.c.b16 %v938, %v937
          %v949 = vpack.c.b16 %v940, %v939
          %v950 = vpack.c.b16 %v942, %v941
          %959 = vmatprep.subr.bf16.mxu0 0
          %960 = vmatpush1.bf16.msra.mxu0 %v943
          %961 = vmatprep.subr.bf16.mxu0 0
          %962 = vmatpush1.bf16.msra.mxu0 %v944
          %963 = vmatprep.subr.bf16.mxu0 0
          %964 = vmatpush1.bf16.msra.mxu0 %v945
          %965 = vmatprep.subr.bf16.mxu0 0
          %966 = vmatpush1.bf16.msra.mxu0 %v946
          %967 = vmatprep.subr.bf16.mxu0 0
          %968 = vmatpush1.bf16.msra.mxu0 %v947
          %969 = vmatprep.subr.bf16.mxu0 0
          %970 = vmatpush1.bf16.msra.mxu0 %v948
          %971 = vmatprep.subr.bf16.mxu0 0
          %972 = vmatpush1.bf16.msra.mxu0 %v949
          %973 = vmatprep.subr.bf16.mxu0 0
          %974 = vmatpush1.bf16.msra.mxu0 %v950
          %975 = vmatprep.subr.bf16.mxu0 0
          %976 = vmatpush1.bf16.msra.mxu0 0
          %977 = vmatprep.subr.bf16.mxu0 0
          %978 = vmatpush1.bf16.msra.mxu0 0
          %979 = vmatprep.subr.bf16.mxu0 0
          %980 = vmatpush1.bf16.msra.mxu0 0
          %981 = vmatprep.subr.bf16.mxu0 0
          %982 = vmatpush1.bf16.msra.mxu0 0
          %983 = vmatprep.subr.bf16.mxu0 0
          %984 = vmatpush1.bf16.msra.mxu0 0
          %985 = vmatprep.subr.bf16.mxu0 0
          %986 = vmatpush1.bf16.msra.mxu0 0
          %987 = vmatprep.subr.bf16.mxu0 0
          %988 = vmatpush1.bf16.msra.mxu0 0
          %989 = vmatprep.subr.bf16.mxu0 0
          %990 = vmatpush1.bf16.msra.mxu0 0
          %991 = vmatprep.mubr.bf16.mxu0 0
          %992 = vmatmul.mubr.bf16.gmra.mrb[0].mxu0 %v662
          %v993 = vpop.f32.mrb[0].mxu0
          %v994 = vadd.f32 %v849, %v993
          %v995 = vpop.f32.mrb[0].mxu0
          %v996 = vpop.f32.mrb[0].mxu0
          %v997 = vadd.f32 %v852, %v996
          %v998 = vpop.f32.mrb[0].mxu0
          %999 = vmatprep.mubr.bf16.mxu0 0
          %1000 = vmatmul.mubr.bf16.gmra.mrb[0].mxu0 %v663
          %v1001 = vpop.f32.mrb[0].mxu0
          %v1002 = vadd.f32 %v857, %v1001
          %v1003 = vpop.f32.mrb[0].mxu0
          %v1004 = vpop.f32.mrb[0].mxu0
          %v1005 = vadd.f32 %v860, %v1004
          %v1006 = vpop.f32.mrb[0].mxu0
          %1007 = vmatprep.mubr.bf16.mxu0 0
          %1008 = vmatmul.mubr.bf16.gmra.mrb[0].mxu0 %v664
          %v1009 = vpop.f32.mrb[0].mxu0
          %v1010 = vadd.f32 %v865, %v1009
          %v1011 = vpop.f32.mrb[0].mxu0
          %v1012 = vpop.f32.mrb[0].mxu0
          %v1013 = vadd.f32 %v868, %v1012
          %v1014 = vpop.f32.mrb[0].mxu0
          %1015 = vmatprep.mubr.bf16.mxu0 0
          %1016 = vmatmul.mubr.bf16.gmra.mrb[0].mxu0 %v665
          %v1017 = vpop.f32.mrb[0].mxu0
          %v1018 = vadd.f32 %v873, %v1017
          %v1019 = vpop.f32.mrb[0].mxu0
          %v1020 = vpop.f32.mrb[0].mxu0
          %v1021 = vadd.f32 %v876, %v1020
          %v1022 = vpop.f32.mrb[0].mxu0
          %1023 = vmatprep.mubr.bf16.mxu0 0
          %1024 = vmatmul.mubr.bf16.gmra.mrb[0].mxu0 %v666
          %v1025 = vpop.f32.mrb[0].mxu0
          %v1026 = vadd.f32 %v881, %v1025
          %v1027 = vpop.f32.mrb[0].mxu0
          %v1028 = vpop.f32.mrb[0].mxu0
          %v1029 = vadd.f32 %v884, %v1028
          %v1030 = vpop.f32.mrb[0].mxu0
          %1031 = vmatprep.mubr.bf16.mxu0 0
          %1032 = vmatmul.mubr.bf16.gmra.mrb[0].mxu0 %v667
          %v1033 = vpop.f32.mrb[0].mxu0
          %v1034 = vadd.f32 %v889, %v1033
          %v1035 = vpop.f32.mrb[0].mxu0
          %v1036 = vpop.f32.mrb[0].mxu0
          %v1037 = vadd.f32 %v892, %v1036
          %v1038 = vpop.f32.mrb[0].mxu0
          %1039 = vmatprep.mubr.bf16.mxu0 0
          %1040 = vmatmul.mubr.bf16.gmra.mrb[0].mxu0 %v668
          %v1041 = vpop.f32.mrb[0].mxu0
          %v1042 = vadd.f32 %v897, %v1041
          %v1043 = vpop.f32.mrb[0].mxu0
          %v1044 = vpop.f32.mrb[0].mxu0
          %v1045 = vadd.f32 %v900, %v1044
          %v1046 = vpop.f32.mrb[0].mxu0
          %1047 = vmatprep.mubr.bf16.mxu0 0
          %1048 = vmatmul.mubr.bf16.gmra.mrb[0].mxu0 %v669
          %v1049 = vpop.f32.mrb[0].mxu0
          %v1050 = vadd.f32 %v905, %v1049
          %v1051 = vpop.f32.mrb[0].mxu0
          %v1052 = vpop.f32.mrb[0].mxu0
          %v1053 = vadd.f32 %v908, %v1052
          %v1054 = vpop.f32.mrb[0].mxu0
          %1055 = vdwg.mxu0
          %v1056 = vmax.f32 %v994, 0.0
          %v1057 = vmax.f32 %v997, 0.0
          %v1058 = vmax.f32 %v1002, 0.0
          %v1059 = vmax.f32 %v1005, 0.0
          %v1060 = vmax.f32 %v1010, 0.0
          %v1061 = vmax.f32 %v1013, 0.0
          %v1062 = vmax.f32 %v1018, 0.0
          %v1063 = vmax.f32 %v1021, 0.0
          %v1064 = vmax.f32 %v1026, 0.0
          %v1065 = vmax.f32 %v1029, 0.0
          %v1066 = vmax.f32 %v1034, 0.0
          %v1067 = vmax.f32 %v1037, 0.0
          %v1068 = vmax.f32 %v1042, 0.0
          %v1069 = vmax.f32 %v1045, 0.0
          %v1070 = vmax.f32 %v1050, 0.0
          %v1071 = vmax.f32 %v1053, 0.0
          %1072 = vst [vmem:[%s339] sm:$0xff] %v1056
          %1073 = vst [vmem:[%s339 + $0x8] sm:$0xff] %v1057
          %1074 = vst [vmem:[%s339 + $0x10] sm:$0xff] %v1058
          %1075 = vst [vmem:[%s339 + $0x18] sm:$0xff] %v1059
          %1076 = vst [vmem:[%s339 + $0x20] sm:$0xff] %v1060
          %1077 = vst [vmem:[%s339 + $0x28] sm:$0xff] %v1061
          %1078 = vst [vmem:[%s339 + $0x30] sm:$0xff] %v1062
          %1079 = vst [vmem:[%s339 + $0x38] sm:$0xff] %v1063
          %1080 = vst [vmem:[%s339 + $0x40] sm:$0xff] %v1064
          %1081 = vst [vmem:[%s339 + $0x48] sm:$0xff] %v1065
          %1082 = vst [vmem:[%s339 + $0x50] sm:$0xff] %v1066
          %1083 = vst [vmem:[%s339 + $0x58] sm:$0xff] %v1067
          %1084 = vst [vmem:[%s339 + $0x60] sm:$0xff] %v1068
          %1085 = vst [vmem:[%s339 + $0x68] sm:$0xff] %v1069
          %1086 = vst [vmem:[%s339 + $0x70] sm:$0xff] %v1070
          %1087 = vst [vmem:[%s339 + $0x78] sm:$0xff] %v1071
        $region68: #{tpu_custom_call.1} parent=39 // pred_fallthru
          _
        %s1088 = sand.u32 %s161, 1
        %s1089 = scalar_lea.sflag [#allocation5], %s1088
        %s1090 = sand.u32 %s161, 1
        %s1091 = smul.addr %s1090, 128
        %s1092 = scalar_lea.vmem [#allocation12], %s1091
        // Predicated region
        $region69: #{tpu_custom_call.1} parent=39 // pred_check
          %p1093 = pneg %p171
        $region70: #{tpu_custom_call.1} parent=39 // pred_check_branch
          %1095 = sbr.rel (%p1093) target = $region72
        $region71: #{tpu_custom_call.1} parent=39 // pred_region
          %s1096 = smul.u32 16, %s28
          %s1098 = ssub.s32 2048, 2048
          %1099 = vsyncadd %s1089, %s1098
          %s1100 = smul.addr %s1096, 128
          %s1101 = scalar_lea.hbm %s5, %s1100
          %s1102 = sshll.u32 %s1092, 4
          %s1103 = int_to_ptr.vmem [resolvable:$true] %s1102
          %1108 = dma.vmem_to_hbm [thread:$0]  %s1103, 2048, %s1101, %s1089, 128, 128, 8
        $region72: #{tpu_custom_call.1} parent=39 // pred_fallthru
          _
      $region40: #{tpu_custom_call.1} parent=5 // pred_fallthru
        _
      %p1109 = scmp.le.s32.totalorder 2, %s19
      // Predicated region
      $region73: #{tpu_custom_call.1} parent=5 // pred_check
        %p1110 = pneg %p1109
      $region74: #{tpu_custom_call.1} parent=5 // pred_check_branch
        %1112 = sbr.rel (%p1110) target = $region76
      $region75: #{tpu_custom_call.1} parent=5 // pred_region
        %s1113 = ssub.s32 %s19, 2
        // Predicated region
        $region77: #{tpu_custom_call.1} parent=75 // pred_check
          %p1114 = pneg %p177
        $region78: #{tpu_custom_call.1} parent=75 // pred_check_branch
          %1116 = sbr.rel (%p1114) target = $region80
        $region79: #{tpu_custom_call.1} parent=75 // pred_region
          %s1117 = sand.u32 %s162, 1
          %s1118 = scalar_lea.sflag [#allocation5], %s1117
          %s1119 = sand.u32 %s162, 1
          %s1120 = smul.addr %s1119, 128
          %s1121 = scalar_lea.vmem [#allocation12], %s1120
          %1122 = dma.done %s1118, 2048
        $region80: #{tpu_custom_call.1} parent=75 // pred_fallthru
          _
      $region76: #{tpu_custom_call.1} parent=5 // pred_fallthru
        _
    $region6: #{tpu_custom_call.1} parent=1 // loop_footer
      %s23 = sadd.s32 1, %s19
    $region7: #{tpu_custom_call.1} parent=1 // loop_footer_branch
      %18 = sbr.rel target = $region3
    $region8: #{tpu_custom_call.1} parent=1 // loop_exit
      _
    %1123 = vsyncpa [#allocation4], 1
    %s1124 = scalar_lea.sflag [#allocation4], 1
    %1125 = vsyncpa %s1124, 1
    %1126 = vsyncpa [#allocation7], 1
    %1127 = vsyncpa [#allocation11], 1
    %1128 = vsyncpa [#allocation5], 1
    %s1129 = scalar_lea.sflag [#allocation5], 1
    %1130 = vsyncpa %s1129, 1

</llo_original>
